<compile_context>
chip_gen: v7x
topology: tpu7x:2x2x1
jax: 0.10.0
libtpu: 0.0.40
codegen_flags: <defaults>
</compile_context>

<pallas_src>
import functools
import math

import jax
import jax.numpy as jnp
from jax import lax
from jax.experimental import pallas as pl
from jax.experimental.pallas import tpu as pltpu

LANES = 128
SUBLANES = 8
CHUNK_ROWS = 512          # rows per in-block sub-chunk (bounds vreg live ranges)


def _cdiv(a, b):
    return -(-a // b)


def _round_up(a, m):
    return _cdiv(a, m) * m


def _row_granule(dtype) -> int:
    # Sub-32-bit dtypes pack along sublanes: bf16 needs 16-row, int8/fp8 32-row tiles.
    return SUBLANES * max(1, 4 // jnp.dtype(dtype).itemsize)


def _device_config():
    """Generation-aware defaults (block rows, #parallel cores, scoped-VMEM limit)."""
    try:
        kind = jax.devices()[0].device_kind.lower()
    except Exception:
        kind = ""
    if "v7" in kind:
        # 2 TCs/chip, ~3.2 TB/s HBM, 64 MiB VMEM: bigger blocks + 2-wide parallel axis.
        return dict(ncores=2, row_tile=8192, vmem_limit=48 * 1024 * 1024)
    if "v6" in kind:
        # Single TC, 128 MiB VMEM: modest block bump, generous scoped-VMEM limit.
        return dict(ncores=1, row_tile=8192, vmem_limit=64 * 1024 * 1024)
    if "v5p" in kind or "v4" in kind:
        # Megacore (2 TensorCore) generations.
        return dict(ncores=2, row_tile=4096, vmem_limit=32 * 1024 * 1024)
    # v5e & default: single TC; default scoped VMEM is only 16 MiB -> keep 32 MiB.
    return dict(ncores=1, row_tile=4096, vmem_limit=32 * 1024 * 1024)


def _choose_grid(rows, target_tile, ncores, row_gran):
    """Pick (tile, nblocks, steps, ncores) so nblocks % ncores == 0 when possible,
    i.e. no grid step ever re-DMAs a clamped duplicate block."""
    tile = min(_round_up(target_tile, row_gran), rows)
    nblocks = _cdiv(rows, tile)
    if ncores > 1:
        if nblocks < ncores:
            ncores = 1
        elif nblocks % ncores:
            gran = _round_up(256, row_gran) if rows >= 2048 else row_gran
            for n_try in range(nblocks + 1, nblocks + 4 * ncores + 1):
                cand = min(_round_up(_cdiv(rows, n_try), gran), rows)
                if _cdiv(rows, cand) % ncores == 0:
                    tile, nblocks = cand, _cdiv(rows, cand)
                    break
            # else: keep the odd split; the one clamped duplicate block is compute-gated.
    steps = _cdiv(nblocks, ncores)
    return tile, nblocks, steps, ncores


def _block_sumsq(x_ref, t_ref, tile, chunk):
    """Sum of (x - t)^2 over a (tile, 128) block, folded to an (8, 128) partial.

    Chunked (<= CHUNK_ROWS rows at a time) so the compiler never has to keep a
    (tile, 128) temporary live across the whole block."""

    def piece(r0, nrows):
        d = (x_ref[pl.ds(r0, nrows), :].astype(jnp.float32)
             - t_ref[pl.ds(r0, nrows), :].astype(jnp.float32))
        return jnp.sum((d * d).reshape(nrows // SUBLANES, SUBLANES, LANES), axis=0)

    nfull, rem = divmod(tile, chunk)
    if nfull == 1 and rem == 0:
        return piece(0, tile)

    acc = jnp.zeros((SUBLANES, LANES), jnp.float32)
    if nfull:
        def body(j, a):
            return a + piece(pl.multiple_of(j * chunk, chunk), chunk)
        acc = lax.fori_loop(0, nfull, body, acc, unroll=min(nfull, 8))
    if rem:
        acc = acc + piece(nfull * chunk, rem)
    return acc


def _mse_partial_kernel(x_ref, t_ref, out_ref, acc_ref, *,
                        rows, tile, chunk, steps, scale):
    c = pl.program_id(0)          # parallel (TensorCore) axis
    i = pl.program_id(1)          # reduction axis ("arbitrary")

    @pl.when(i == 0)
    def _init():
        acc_ref[...] = jnp.zeros_like(acc_ref)

    block_row0 = (c * steps + i) * tile

    # Hot path: block fully in range -> plain sub/mul/add, no mask/iota.
    @pl.when(block_row0 + tile <= rows)
    def _full_block():
        acc_ref[...] += _block_sumsq(x_ref, t_ref, tile, chunk)

    # Cold path: the single partial tail block (only emitted if one can exist).
    # Clamped duplicate blocks (block_row0 >= rows) fall through both branches.
    if rows % tile:
        @pl.when(jnp.logical_and(block_row0 < rows, block_row0 + tile > rows))
        def _tail_block():
            d = x_ref[...].astype(jnp.float32) - t_ref[...].astype(jnp.float32)
            sq = d * d
            row_ids = block_row0 + lax.broadcasted_iota(jnp.int32, (tile, LANES), 0)
            sq = jnp.where(row_ids < rows, sq, 0.0)
            acc_ref[...] += jnp.sum(
                sq.reshape(tile // SUBLANES, SUBLANES, LANES), axis=0)

    # Finalize: one cross-lane reduce (XLU) + mean scaling into a per-core SMEM scalar.
    @pl.when(i == steps - 1)
    def _finalize():
        out_ref[0, 0] = jnp.sum(acc_ref[...]) * scale


@functools.partial(jax.jit, static_argnames=("row_tile", "ncores"))
def content_loss_forward(inp, target, *, row_tile=None, ncores=None):
    """Mirrors ContentLossLayer.forward: returns (inp unchanged, mse_loss(inp, target))."""
    if inp.shape != target.shape:
        raise ValueError(f"shape mismatch: {inp.shape} vs {target.shape}")
    if inp.ndim != 4:
        raise ValueError(f"Input tensor has to be [B, C, H, W], but {inp.shape} met!")

    cfg = _device_config()
    target_tile = int(row_tile) if row_tile is not None else cfg["row_tile"]
    n_cores = int(ncores) if ncores is not None else cfg["ncores"]

    n = math.prod(inp.shape)
    if n == 0:
        return inp, jnp.float32(float("nan"))

    row_gran = _row_granule(inp.dtype)
    granule = row_gran * LANES
    main = (n // granule) * granule          # lane-dense prefix handled by the kernel
    tail = n - main                          # ragged remainder (< granule elements)
    inv_n = 1.0 / float(n)

    loss = jnp.zeros((), jnp.float32)

    if main:
        rows = main // LANES
        if tail:
            # TODO(synk): the prefix slice materializes a copy; only hit when
            # numel % (row_gran*128) != 0, which real NCHW feature maps avoid.
            x2d = inp.reshape(-1)[:main].reshape(rows, LANES)
            t2d = target.reshape(-1)[:main].reshape(rows, LANES)
        else:
            x2d = inp.reshape(rows, LANES)
            t2d = target.reshape(rows, LANES)

        target_tile = max(row_gran, _round_up(target_tile, row_gran))
        tile, nblocks, steps, n_cores = _choose_grid(rows, target_tile, n_cores, row_gran)
        chunk = min(CHUNK_ROWS, tile)

        if n_cores * steps == nblocks:
            row_map = lambda c, i: (c * steps + i, 0)
        else:
            # Clamp keeps the DMA in bounds for the (rare) uneven split; the
            # duplicate block's compute is gated off inside the kernel.
            row_map = lambda c, i: (jnp.minimum(c * steps + i, nblocks - 1), 0)

        kernel = functools.partial(
            _mse_partial_kernel,
            rows=rows, tile=tile, chunk=chunk, steps=steps, scale=inv_n)

        per_core = pl.pallas_call(
            kernel,
            out_shape=jax.ShapeDtypeStruct((n_cores, 1), jnp.float32),
            grid_spec=pltpu.PrefetchScalarGridSpec(
                num_scalar_prefetch=0,
                grid=(n_cores, steps),
                in_specs=[
                    pl.BlockSpec((tile, LANES), row_map),
                    pl.BlockSpec((tile, LANES), row_map),
                ],
                out_specs=pl.BlockSpec(
                    (1, 1), lambda c, i: (c, 0),
                    memory_space=pltpu.MemorySpace.SMEM),
                scratch_shapes=[pltpu.VMEM((SUBLANES, LANES), jnp.float32)],
            ),
            compiler_params=pltpu.CompilerParams(
                # NOTE: on v7x, if profiling shows only one TensorCore busy,
                # switch the leading axis to pltpu.CORE_PARALLEL.
                dimension_semantics=("parallel", "arbitrary"),
                vmem_limit_bytes=cfg["vmem_limit"],
            ),
        )(x2d, t2d)

        loss = jnp.sum(per_core)             # n_cores scalars (1 or 2)

    if tail:
        xt = inp.reshape(-1)[main:].astype(jnp.float32)
        tt = target.reshape(-1)[main:].astype(jnp.float32)
        loss = loss + jnp.sum((xt - tt) ** 2) * jnp.float32(inv_n)

    return inp, loss


def _close(a, b, tol=1e-5):
    return bool(jnp.abs(a - b) <= tol * (1.0 + jnp.abs(b)))


if __name__ == "__main__":
    key = jax.random.PRNGKey(0)
    k1, k2, k3, k4, k5, k6, k7, k8 = jax.random.split(key, 8)

    # Primary: NCHW feature map matching the PyTorch module's convention.
    inp = jax.random.normal(k1, (2, 4, 16, 16), dtype=jnp.float32)
    tgt = jax.random.normal(k2, (2, 4, 16, 16), dtype=jnp.float32)
    out, loss = jax.block_until_ready(content_loss_forward(inp, tgt))
    ref = jnp.mean((inp - tgt) ** 2)
    assert out.shape == inp.shape and out.dtype == inp.dtype
    assert bool(jnp.all(out == inp)), "forward must return the input unchanged"
    assert _close(loss, ref), (loss, ref)

    # Ragged numel (not a multiple of 1024): kernel on the prefix + jnp tail path.
    inp2 = jax.random.normal(k3, (2, 4, 16, 18), dtype=jnp.float32)
    tgt2 = jax.random.normal(k4, (2, 4, 16, 18), dtype=jnp.float32)
    out2, loss2 = jax.block_until_ready(content_loss_forward(inp2, tgt2, row_tile=8))
    ref2 = jnp.mean((inp2 - tgt2) ** 2)
    assert bool(jnp.all(out2 == inp2))
    assert _close(loss2, ref2), (loss2, ref2)

    # Multi-block grid with a partial (masked) tail block and a 2-wide parallel
    # axis, forcing the block-count parity adjustment.
    inp3 = jax.random.normal(k5, (1, 5, 24, 128), dtype=jnp.float32)   # 120 slab rows
    tgt3 = jax.random.normal(k6, (1, 5, 24, 128), dtype=jnp.float32)
    out3, loss3 = jax.block_until_ready(
        content_loss_forward(inp3, tgt3, row_tile=48, ncores=2))
    ref3 = jnp.mean((inp3 - tgt3) ** 2)
    assert bool(jnp.all(out3 == inp3))
    assert _close(loss3, ref3), (loss3, ref3)

    # Large-enough block to exercise the chunked (fori_loop) in-block reduction.
    inp4 = jax.random.normal(k7, (2, 8, 64, 128), dtype=jnp.float32)   # 1024 slab rows
    tgt4 = jax.random.normal(k8, (2, 8, 64, 128), dtype=jnp.float32)
    out4, loss4 = jax.block_until_ready(content_loss_forward(inp4, tgt4))
    ref4 = jnp.mean((inp4 - tgt4) ** 2)
    assert bool(jnp.all(out4 == inp4))
    assert _close(loss4, ref4), (loss4, ref4)

    print("KERNEL_OK")
</pallas_src>

<mosaic_0001>
module attributes {stable_mosaic.version = 11 : i64} {
  func.func @_mse_partial_kernel(%arg0: i32, %arg1: i32, %arg2: memref<16x128xf32, #tpu.memory_space<vmem>>, %arg3: memref<16x128xf32, #tpu.memory_space<vmem>>, %arg4: memref<1x1xf32, #tpu.memory_space<smem>>, %arg5: memref<8x128xf32, #tpu.memory_space<vmem>>) attributes {dimension_semantics = [#tpu.dimension_semantics<parallel>, #tpu.dimension_semantics<arbitrary>], iteration_bounds = array<i64: 1, 1>, scalar_prefetch = 0 : i64, scratch_operands = 1 : i64, tpu.core_type = #tpu.core_type<tc>, window_params = [{transform_indices = @transform_0, window_bounds = array<i64: 16, 128>}, {transform_indices = @transform_1, window_bounds = array<i64: 16, 128>}, {transform_indices = @transform_2, window_bounds = array<i64: 1, 1>}]} {
    %c0_i32 = arith.constant 0 : i32
    %0 = arith.cmpi eq, %arg1, %c0_i32 : i32
    %1 = arith.extui %0 : i1 to i32
    %c0_i32_0 = arith.constant 0 : i32
    %2 = arith.cmpi ne, %1, %c0_i32_0 : i32
    scf.if %2 {
      %cst = arith.constant 0.000000e+00 : f32
      %13 = vector.broadcast %cst : f32 to vector<8x128xf32>
      %c0 = arith.constant 0 : index
      %c0_6 = arith.constant 0 : index
      %14 = vector.load %arg5[%c0, %c0_6] : memref<8x128xf32, #tpu.memory_space<vmem>>, vector<8x128xf32>
      tpu.vector_store %arg5[%c0, %c0_6], %13 {strides = array<i32>} : memref<8x128xf32, #tpu.memory_space<vmem>>, vector<8x128xf32>,
    } else {
    }
    %c1_i32 = arith.constant 1 : i32
    %3 = arith.muli %arg0, %c1_i32 : i32
    %4 = arith.addi %3, %arg1 : i32
    %c16_i32 = arith.constant 16 : i32
    %5 = arith.muli %4, %c16_i32 : i32
    %c16_i32_1 = arith.constant 16 : i32
    %6 = arith.addi %5, %c16_i32_1 : i32
    %c16_i32_2 = arith.constant 16 : i32
    %7 = arith.cmpi sle, %6, %c16_i32_2 : i32
    %8 = arith.extui %7 : i1 to i32
    %c0_i32_3 = arith.constant 0 : i32
    %9 = arith.cmpi ne, %8, %c0_i32_3 : i32
    scf.if %9 {
      %c0 = arith.constant 0 : index
      %c0_6 = arith.constant 0 : index
      %13 = vector.load %arg5[%c0, %c0_6] : memref<8x128xf32, #tpu.memory_space<vmem>>, vector<8x128xf32>
      %c0_7 = arith.constant 0 : index
      %c0_8 = arith.constant 0 : index
      %14 = vector.load %arg2[%c0_7, %c0_8] : memref<16x128xf32, #tpu.memory_space<vmem>>, vector<16x128xf32>
      %c0_9 = arith.constant 0 : index
      %c0_10 = arith.constant 0 : index
      %15 = vector.load %arg3[%c0_9, %c0_10] : memref<16x128xf32, #tpu.memory_space<vmem>>, vector<16x128xf32>
      %16 = arith.subf %14, %15 : vector<16x128xf32>
      %17 = arith.mulf %16, %16 : vector<16x128xf32>
      %18 = vector.shape_cast %17 : vector<16x128xf32> to vector<2x8x128xf32>
      %cst = arith.constant dense<0.000000e+00> : vector<8x128xf32>
      %19 = vector.multi_reduction <add>, %18, %cst [0] : vector<2x8x128xf32> to vector<8x128xf32>
      %20 = arith.addf %13, %19 : vector<8x128xf32>
      %c0_11 = arith.constant 0 : index
      %c0_12 = arith.constant 0 : index
      %21 = vector.load %arg5[%c0_11, %c0_12] : memref<8x128xf32, #tpu.memory_space<vmem>>, vector<8x128xf32>
      tpu.vector_store %arg5[%c0_11, %c0_12], %20 {strides = array<i32>} : memref<8x128xf32, #tpu.memory_space<vmem>>, vector<8x128xf32>,
    } else {
    }
    %c0_i32_4 = arith.constant 0 : i32
    %10 = arith.cmpi eq, %arg1, %c0_i32_4 : i32
    %11 = arith.extui %10 : i1 to i32
    %c0_i32_5 = arith.constant 0 : i32
    %12 = arith.cmpi ne, %11, %c0_i32_5 : i32
    scf.if %12 {
      %c0 = arith.constant 0 : index
      %c0_6 = arith.constant 0 : index
      %13 = vector.load %arg5[%c0, %c0_6] : memref<8x128xf32, #tpu.memory_space<vmem>>, vector<8x128xf32>
      %14 = vector.shape_cast %13 : vector<8x128xf32> to vector<1x8x128xf32>
      %cst = arith.constant dense<0.000000e+00> : vector<1xf32>
      %15 = vector.multi_reduction <add>, %14, %cst [1, 2] : vector<1x8x128xf32> to vector<1xf32>
      %16 = vector.shape_cast %15 : vector<1xf32> to vector<1x1x1xf32>
      %17 = vector.extract %16[0, 0, 0] : f32 from vector<1x1x1xf32>
      %cst_7 = arith.constant 4.8828125E-4 : f32
      %18 = arith.mulf %17, %cst_7 : f32
      %c0_8 = arith.constant 0 : index
      %c0_9 = arith.constant 0 : index
      %19 = memref.load %arg4[%c0_8, %c0_9] : memref<1x1xf32, #tpu.memory_space<smem>>
      memref.store %18, %arg4[%c0_8, %c0_9] : memref<1x1xf32, #tpu.memory_space<smem>>
    } else {
    }
    return
  }
  func.func @transform_0(%arg0: i32, %arg1: i32) -> (i32, i32) {
    %c1_i32 = arith.constant 1 : i32
    %0 = arith.muli %arg0, %c1_i32 : i32
    %1 = arith.addi %0, %arg1 : i32
    %c0_i32 = arith.constant 0 : i32
    %c0_i32_0 = arith.constant 0 : i32
    return %1, %c0_i32 : i32, i32
  }
  func.func @transform_1(%arg0: i32, %arg1: i32) -> (i32, i32) {
    %c1_i32 = arith.constant 1 : i32
    %0 = arith.muli %arg0, %c1_i32 : i32
    %1 = arith.addi %0, %arg1 : i32
    %c0_i32 = arith.constant 0 : i32
    %c0_i32_0 = arith.constant 0 : i32
    return %1, %c0_i32 : i32, i32
  }
  func.func @transform_2(%arg0: i32, %arg1: i32) -> (i32, i32) {
    %c0_i32 = arith.constant 0 : i32
    %c0_i32_0 = arith.constant 0 : i32
    return %arg0, %c0_i32 : i32, i32
  }
}

</mosaic_0001>

<llo_original>
// kernel: content_loss_forward.1
$region0: #{content_loss_forward.1}
  #allocation0 [shape = 'u32[]', space=smem, size = 0x4, offset = 0x4, fixed_abs, tag = 'smem constant byte address 0x4 - core index']
  #allocation1 [shape = 'u32[144,128]{1,0:T(1,128)}', space=vmem, size = 0x12000, scoped, tag = 'internal scratch']
  #allocation2 [shape = 'f32[8,128]{1,0:T(8,128)}', space=vmem, size = 0x1000, scoped, tag = 'scratch operand']
  %s0 = inlined_call_operand.vmem [shape: f32[16,128], index: 0, kind: input, shape index: {}]
  %s1 = inlined_call_operand.vmem [shape: f32[16,128], index: 1, kind: input, shape index: {}]
  %s2 = inlined_call_operand.hbm [shape: f32[1,1], index: 2, kind: output, shape index: {}]
  %s3 = sld [smem:[#allocation0]]
  $region30: #{content_loss_forward.1} parent=0
    _
  %s5 = ssub.s32 1, %s3
  %s6 = scalar_select 0, %s5, %s3
  $region1: #{content_loss_forward.1} parent=0
    #allocation3 [shape = 'u8[512]{0}', space=smem, size = 0x200, scoped, tag = 'output window, operand 0, single buffered']
    #allocation4 [shape = 's32[1]{0}', space=sflag, size = 0x4, scoped, tag = 'scoped memory for content_loss_forward.1']
    %7 = vsyncpa [#allocation4], 0
    // Predicated region
    $region2: #{content_loss_forward.1} parent=1 // pred_check
      _
    $region3: #{content_loss_forward.1} parent=1 // pred_check_branch
      %9 = sbr.rel (0) target = $region5
    $region4: #{content_loss_forward.1} parent=1 // pred_region
      %s10 = sadd.s32 0, 0
      %s11 = smul.u32 2, %s10
      %p12 = scmp.lt.s32.totalorder %s11, 1
      %s13 = scalar_select %p12, %s11, 1
      %s14 = smul.addr %s13, 8
      %s15 = scalar_lea.vmem %s0, %s14
      %s16 = sadd.s32 0, 0
      %s17 = smul.u32 2, %s16
    $region5: #{content_loss_forward.1} parent=1 // pred_fallthru
      _
    // Predicated region
    $region6: #{content_loss_forward.1} parent=1 // pred_check
      _
    $region7: #{content_loss_forward.1} parent=1 // pred_check_branch
      %19 = sbr.rel (0) target = $region9
    $region8: #{content_loss_forward.1} parent=1 // pred_region
      %s20 = sadd.s32 0, 0
      %s21 = smul.u32 2, %s20
      %p22 = scmp.lt.s32.totalorder %s21, 1
      %s23 = scalar_select %p22, %s21, 1
      %s24 = smul.addr %s23, 8
      %s25 = scalar_lea.vmem %s1, %s24
      %s26 = sadd.s32 0, 0
      %s27 = smul.u32 2, %s26
    $region9: #{content_loss_forward.1} parent=1 // pred_fallthru
      _
    %s28 = sadd.s32 0, 0
    %s29 = smul.u32 2, %s28
    %p30 = scmp.lt.s32.totalorder %s29, 1
    %s31 = scalar_select %p30, %s29, 1
    %s32 = smul.addr %s31, 8
    %s33 = scalar_lea.vmem %s0, %s32
    %s34 = sadd.s32 0, 0
    %s35 = smul.u32 2, %s34
    %p36 = scmp.lt.s32.totalorder %s35, 1
    %s37 = scalar_select %p36, %s35, 1
    %s38 = smul.addr %s37, 8
    %s39 = scalar_lea.vmem %s1, %s38
    %s40 = sadd.s32 0, 0
    %s41 = smul.u32 2, %s40
    %p42 = scmp.lt.s32.totalorder %s41, 1
    %s43 = scalar_select %p42, %s41, 1
    %s44 = smul.addr %s43, 8
    %s45 = scalar_lea.vmem %s0, %s44
    %s46 = sadd.s32 0, 0
    %s47 = smul.u32 2, %s46
    %s48 = sadd.s32 0, 0
    %s49 = smul.u32 2, %s48
    %p50 = scmp.lt.s32.totalorder %s49, 1
    %s51 = scalar_select %p50, %s49, 1
    %s52 = smul.addr %s51, 8
    %s53 = scalar_lea.vmem %s1, %s52
    %s54 = sadd.s32 0, 0
    %s55 = smul.u32 2, %s54
    %p56 = scmp.eq.s32.totalorder 0, 0
    // Predicated region
    $region10: #{content_loss_forward.1} parent=1 // pred_check
      %p57 = pneg %p56
    $region11: #{content_loss_forward.1} parent=1 // pred_check_branch
      %59 = sbr.rel (%p57) target = $region13
    $region12: #{content_loss_forward.1} parent=1 // pred_region
      %60 = vst [vmem:[#allocation2] sm:$0xff] 0.0
    $region13: #{content_loss_forward.1} parent=1 // pred_fallthru
      _
    %s61 = sadd.s32 0, 0
    %s62 = smul.u32 %s61, 16
    %s63 = sadd.s32 %s62, 16
    %p64 = scmp.le.s32.totalorder %s63, 16
    // Predicated region
    $region14: #{content_loss_forward.1} parent=1 // pred_check
      %p65 = pneg %p64
    $region15: #{content_loss_forward.1} parent=1 // pred_check_branch
      %67 = sbr.rel (%p65) target = $region17
    $region16: #{content_loss_forward.1} parent=1 // pred_region
      %v68 = vld [vmem:[#allocation2] sm:$0xff]
      %v69 = vld [vmem:[%s45] sm:$0xff]
      %v70 = vld [vmem:[%s45 + $0x8] sm:$0xff]
      %v71 = vld [vmem:[%s53] sm:$0xff]
      %v72 = vld [vmem:[%s53 + $0x8] sm:$0xff]
      %v73 = vsub.f32 %v69, %v71
      %v74 = vsub.f32 %v70, %v72
      %v75 = vmul.f32 %v73, %v73
      %v76 = vmul.f32 %v74, %v74
      %v77 = vadd.f32 %v75, %v76
      %v78 = vadd.f32 %v68, %v77
      %79 = vst [vmem:[#allocation2] sm:$0xff] %v78
    $region17: #{content_loss_forward.1} parent=1 // pred_fallthru
      _
    // Predicated region
    $region18: #{content_loss_forward.1} parent=1 // pred_check
      %p80 = pneg %p56
    $region19: #{content_loss_forward.1} parent=1 // pred_check_branch
      %82 = sbr.rel (%p80) target = $region21
    $region20: #{content_loss_forward.1} parent=1 // pred_region
      %v83 = vld [vmem:[#allocation2] sm:$0xff]
      %84 = vadd.xlane.f32.xlu0 %v83
      %v85 = vpop.xlane.xlu0 %84
      %v86 = vrot.slane %v85, 4
      %v87 = vadd.f32 %v85, %v86
      %v88 = vrot.slane %v87, 2
      %v89 = vadd.f32 %v87, %v88
      %v90 = vrot.slane %v89, 1
      %v91 = vadd.f32 %v89, %v90
      %s92 = vtos %v91
      %s93 = smul.f32 %s92, 0.00048828125
      %s94 = scalar_lea.smem [#allocation3], 0
      %95 = sst [smem:[%s94]] %s93
    $region21: #{content_loss_forward.1} parent=1 // pred_fallthru
      _
    // Predicated region
    $region22: #{content_loss_forward.1} parent=1 // pred_check
      _
    $region23: #{content_loss_forward.1} parent=1 // pred_check_branch
      %97 = sbr.rel (0) target = $region25
    $region24: #{content_loss_forward.1} parent=1 // pred_region
      %s99 = ssub.s32 16, 16
      %100 = vsyncadd [#allocation4], %s99
      %103 = dma.smem_to_hbm [#allocation3], 16, %s2, [#allocation4]
    $region25: #{content_loss_forward.1} parent=1 // pred_fallthru
      _
    // Predicated region
    $region26: #{content_loss_forward.1} parent=1 // pred_check
      _
    $region27: #{content_loss_forward.1} parent=1 // pred_check_branch
      %105 = sbr.rel (0) target = $region29
    $region28: #{content_loss_forward.1} parent=1 // pred_region
      %106 = dma.done [#allocation4], 16
    $region29: #{content_loss_forward.1} parent=1 // pred_fallthru
      _
    %107 = sfence
    %108 = vsyncpa [#allocation4], 1

</llo_original>
